<compile_context>
chip_gen: v7x
topology: tpu7x:2x2x1
jax: 0.10.0
libtpu: 0.0.40
codegen_flags: <defaults>
</compile_context>

<pallas_src>
import functools

import jax
import jax.numpy as jnp
from jax.experimental import pallas as pl
from jax.experimental.pallas import tpu as pltpu

# TODO(synk): only sz=None/1 (global pooling) is implemented; general adaptive
# pooling to sz>1 output bins is not covered by this kernel.


def _round_up(x: int, m: int) -> int:
    return (x + m - 1) // m * m


def _vmem_capacity_bytes() -> int:
    try:
        cap = int(pltpu.get_tpu_info().vmem_capacity_bytes)
    except Exception:
        cap = 64 * 1024 * 1024  # conservative fallback (v7x per-core VMEM)
    # Clamp to a sane per-core range (v7x: 64 MiB, v5e/v6e: 128 MiB).
    return min(max(cap, 64 * 1024 * 1024), 128 * 1024 * 1024)


def _merge_columns(mx_f32, avg_f32, out_dtype):
    """Build the (row_tile, 2) [max ; avg] value so a single store is emitted
    (v5e has one vector-store slot; two narrow masked stores were wasteful).
    Uses lane broadcast + select, which lowers unconditionally (no minor-dim
    concatenate needed)."""
    col = jax.lax.broadcasted_iota(jnp.int32, (mx_f32.shape[0], 2), 1)
    return jnp.where(col == 0, mx_f32, avg_f32).astype(out_dtype)


def _pool_kernel_single(x_ref, out_ref, *, inv_spatial):
    """Full H*W extent in one block: reduce and write the merged output once."""
    x = x_ref[...]  # native dtype; no full-tile f32 temporary
    mx = jnp.max(x, axis=-1, keepdims=True).astype(jnp.float32)
    avg = jnp.sum(x, axis=-1, keepdims=True, dtype=jnp.float32) * inv_spatial
    out_ref[...] = _merge_columns(mx, avg, out_ref.dtype)


def _pool_kernel_chunked(x_ref, out_ref, max_acc, sum_acc, *,
                         spatial, spatial_chunk, inv_spatial):
    """H*W split over the last ('arbitrary') grid axis: f32 running max/sum."""
    k = pl.program_id(1)
    last_k = pl.num_programs(1) - 1

    @pl.when(k == 0)
    def _init():
        max_acc[...] = jnp.full_like(max_acc, -jnp.inf)
        sum_acc[...] = jnp.zeros_like(sum_acc)

    x = x_ref[...]  # native dtype (row_tile, spatial_chunk)

    def _accumulate(xv):
        max_acc[...] = jnp.maximum(
            max_acc[...], jnp.max(xv, axis=-1, keepdims=True).astype(jnp.float32))
        sum_acc[...] = sum_acc[...] + jnp.sum(
            xv, axis=-1, keepdims=True, dtype=jnp.float32)

    if spatial % spatial_chunk != 0:
        # Only the last chunk is ragged: unmasked fast path for all full chunks,
        # native-dtype masking (no f32 temp) on the last one.
        @pl.when(k < last_k)
        def _full():
            _accumulate(x)

        @pl.when(k == last_k)
        def _ragged():
            lane = jax.lax.broadcasted_iota(jnp.int32, x.shape, 1)
            valid = (k * spatial_chunk + lane) < spatial
            if jnp.issubdtype(x.dtype, jnp.floating):
                neg = jnp.array(-jnp.inf, x.dtype)
            else:
                neg = jnp.array(jnp.iinfo(x.dtype).min, x.dtype)
            x_max = jnp.where(valid, x, neg)
            x_sum = jnp.where(valid, x, jnp.zeros((), x.dtype))
            max_acc[...] = jnp.maximum(
                max_acc[...],
                jnp.max(x_max, axis=-1, keepdims=True).astype(jnp.float32))
            sum_acc[...] = sum_acc[...] + jnp.sum(
                x_sum, axis=-1, keepdims=True, dtype=jnp.float32)
    else:
        _accumulate(x)

    @pl.when(k == last_k)
    def _finalize():
        out_ref[...] = _merge_columns(
            max_acc[...], sum_acc[...] * inv_spatial, out_ref.dtype)


def adaptive_concat_pool2d(x, *, block_bytes=4 * 1024 * 1024):
    """x: (N, C, H, W) -> (N, 2*C, 1, 1), torch.cat([max_pool, avg_pool], 1).

    `block_bytes` caps the per-buffer input block; ~2-8 MiB already saturates
    HBM while keeping >= 4 pipeline steps per TensorCore."""
    n, c, h, w = x.shape
    rows = n * c
    spatial = h * w

    itemsize = jnp.dtype(x.dtype).itemsize
    sublane = max(8, 32 // itemsize)  # 8 rows f32, 16 bf16, 32 int8/fp8
    block_bytes = max(int(block_bytes), sublane * 128 * itemsize)

    # --- spatial chunking: only when even a minimal (sublane-row) block with
    # the full, lane-padded H*W extent would overflow the block budget. ------
    if sublane * _round_up(spatial, 128) * itemsize <= block_bytes:
        spatial_chunk = spatial
        chunked = False
    else:
        spatial_chunk = max(128, (block_bytes // (sublane * itemsize)) // 128 * 128)
        chunked = True
    num_k = pl.cdiv(spatial, spatial_chunk)

    # --- row tile: small blocks (<= block_bytes) and, on large problems, an
    # even ~8-way split of the "parallel" axis so v7x megacore stays balanced
    # and each TensorCore still pipelines several steps. ----------------------
    rows_aligned = _round_up(rows, sublane)
    lane_bytes = _round_up(spatial_chunk, 128) * itemsize
    cap_rows = max(sublane, (block_bytes // lane_bytes) // sublane * sublane)
    max_blocks = max(1, rows_aligned // sublane)
    min_blocks = pl.cdiv(rows_aligned, cap_rows)
    target_blocks = max(min_blocks, min(8, max_blocks))
    if max_blocks >= 2:
        target_blocks = max(2, target_blocks)
        if target_blocks % 2:
            target_blocks += 1
    row_tile = min(rows_aligned,
                   _round_up(pl.cdiv(rows_aligned, target_blocks), sublane))
    num_i = pl.cdiv(rows_aligned, row_tile)
    rows_padded = num_i * row_tile

    # No jnp.pad: the ragged last row block reads OOB rows; their (garbage)
    # results land only in output rows that the [:rows] slice below discards.
    x2d = x.reshape(rows, spatial)

    inv_spatial = 1.0 / float(spatial)

    # Actual VMEM footprint: double-buffered input blocks + tiny output/scratch.
    vmem_usage = 2 * row_tile * lane_bytes + 2 * row_tile * 2 * itemsize \
        + 2 * row_tile * 4
    cap = _vmem_capacity_bytes()
    vmem_limit = int(min(cap - (16 << 20), max(32 << 20, vmem_usage + (8 << 20))))

    if chunked:
        kernel = functools.partial(
            _pool_kernel_chunked,
            spatial=spatial, spatial_chunk=spatial_chunk, inv_spatial=inv_spatial)
        grid = (num_i, num_k)
        in_specs = [pl.BlockSpec((row_tile, spatial_chunk), lambda i, k: (i, k))]
        out_specs = pl.BlockSpec((row_tile, 2), lambda i, k: (i, 0))
        scratch_shapes = [pltpu.VMEM((row_tile, 1), jnp.float32),
                          pltpu.VMEM((row_tile, 1), jnp.float32)]
        dim_sem = ("parallel", "arbitrary")
    else:
        # Common path: no reduction axis at all (drop the degenerate k level).
        kernel = functools.partial(_pool_kernel_single, inv_spatial=inv_spatial)
        grid = (num_i,)
        in_specs = [pl.BlockSpec((row_tile, spatial), lambda i: (i, 0))]
        out_specs = pl.BlockSpec((row_tile, 2), lambda i: (i, 0))
        scratch_shapes = []
        dim_sem = ("parallel",)

    out = pl.pallas_call(
        kernel,
        out_shape=jax.ShapeDtypeStruct((rows_padded, 2), x.dtype),
        grid_spec=pltpu.PrefetchScalarGridSpec(
            num_scalar_prefetch=0,
            grid=grid,
            # TODO(synk): if profiling ever shows the input DMA still exposed
            # on v7x, sweep pipeline_mode=pl.Buffered(3) on the input spec
            # (and budget 3 buffers instead of 2 above).
            in_specs=in_specs,
            out_specs=out_specs,
            scratch_shapes=scratch_shapes,
        ),
        compiler_params=pltpu.CompilerParams(
            dimension_semantics=dim_sem,
            vmem_limit_bytes=vmem_limit,
        ),
    )(x2d)

    # TODO(synk): integer (int8/fp8) inputs would truncate the average on the
    # cast back to the input dtype; emit f32 outputs if that path ever matters.
    pooled = out[:rows]
    max_pool = pooled[:, 0].reshape(n, c, 1, 1)
    avg_pool = pooled[:, 1].reshape(n, c, 1, 1)
    return jnp.concatenate([max_pool, avg_pool], axis=1)


def _reference(x):
    return jnp.concatenate(
        [jnp.max(x, axis=(2, 3), keepdims=True),
         jnp.mean(x, axis=(2, 3), keepdims=True)],
        axis=1,
    )


if __name__ == "__main__":
    key = jax.random.PRNGKey(0)
    k1, k2, k3 = jax.random.split(key, 3)

    # 1) Small NCHW feature map, as implied by the module's forward.
    x = jax.random.normal(k1, (2, 4, 16, 16), dtype=jnp.float32)
    out = jax.block_until_ready(adaptive_concat_pool2d(x))
    assert out.shape == (2, 8, 1, 1), out.shape
    assert jnp.allclose(out, _reference(x), atol=1e-6, rtol=1e-6)

    # 2) Default (non-chunked) path with H*W NOT a multiple of 128 and a
    #    ragged last row block: checks lane-pad masking of the reductions.
    x2 = jax.random.normal(k2, (3, 5, 12, 20), dtype=jnp.float32)
    out2 = jax.block_until_ready(adaptive_concat_pool2d(x2))
    assert out2.shape == (3, 10, 1, 1), out2.shape
    assert jnp.allclose(out2, _reference(x2), atol=1e-5, rtol=1e-5)

    # 3) Force the chunked (spatial-reduction) path with a ragged last spatial
    #    chunk and a ragged last row block via a tiny per-block budget.
    x3 = jax.random.normal(k3, (3, 5, 12, 20), dtype=jnp.float32)
    out3 = jax.block_until_ready(adaptive_concat_pool2d(x3, block_bytes=4 * 1024))
    assert out3.shape == (3, 10, 1, 1), out3.shape
    assert jnp.allclose(out3, _reference(x3), atol=1e-5, rtol=1e-5)

    print("KERNEL_OK")
</pallas_src>

<mosaic_0001>
module attributes {stable_mosaic.version = 11 : i64} {
  func.func @_pool_kernel_single(%arg0: i32, %arg1: memref<8x256xf32, #tpu.memory_space<vmem>>, %arg2: memref<8x2xf32, #tpu.memory_space<vmem>>) attributes {dimension_semantics = [#tpu.dimension_semantics<parallel>], iteration_bounds = array<i64: 1>, scalar_prefetch = 0 : i64, scratch_operands = 0 : i64, tpu.core_type = #tpu.core_type<tc>, window_params = [{transform_indices = @transform_0, window_bounds = array<i64: 8, 256>}, {transform_indices = @transform_1, window_bounds = array<i64: 8, 2>}]} {
    %c0 = arith.constant 0 : index
    %c0_0 = arith.constant 0 : index
    %0 = vector.load %arg1[%c0, %c0_0] : memref<8x256xf32, #tpu.memory_space<vmem>>, vector<8x256xf32>
    %cst = arith.constant dense<0xFF800000> : vector<8xf32>
    %1 = vector.multi_reduction <maximumf>, %0, %cst [1] : vector<8x256xf32> to vector<8xf32>
    %2 = vector.shape_cast %1 : vector<8xf32> to vector<8x1xf32>
    %cst_1 = arith.constant dense<0.000000e+00> : vector<8xf32>
    %3 = vector.multi_reduction <add>, %0, %cst_1 [1] : vector<8x256xf32> to vector<8xf32>
    %4 = vector.shape_cast %3 : vector<8xf32> to vector<8x1xf32>
    %cst_2 = arith.constant 3.906250e-03 : f32
    %5 = vector.broadcast %cst_2 : f32 to vector<8x1xf32>
    %6 = arith.mulf %4, %5 : vector<8x1xf32>
    %7 = tpu.iota {dimensions = array<i32: 1>} : vector<8x2xi32>
    %c0_i32 = arith.constant 0 : i32
    %8 = vector.broadcast %c0_i32 : i32 to vector<8x2xi32>
    %9 = arith.cmpi eq, %7, %8 : vector<8x2xi32>
    %10 = vector.shape_cast %2 : vector<8x1xf32> to vector<8x1xf32>
    %11 = vector.broadcast %10 : vector<8x1xf32> to vector<8x2xf32>
    %12 = vector.shape_cast %6 : vector<8x1xf32> to vector<8x1xf32>
    %13 = vector.broadcast %12 : vector<8x1xf32> to vector<8x2xf32>
    %14 = arith.select %9, %11, %13 : vector<8x2xi1>, vector<8x2xf32>
    %c0_3 = arith.constant 0 : index
    %c0_4 = arith.constant 0 : index
    %15 = vector.load %arg2[%c0_3, %c0_4] : memref<8x2xf32, #tpu.memory_space<vmem>>, vector<8x2xf32>
    tpu.vector_store %arg2[%c0_3, %c0_4], %14 {strides = array<i32>} : memref<8x2xf32, #tpu.memory_space<vmem>>, vector<8x2xf32>,
    return
  }
  func.func @transform_0(%arg0: i32) -> (i32, i32) {
    %c0_i32 = arith.constant 0 : i32
    %c0_i32_0 = arith.constant 0 : i32
    return %arg0, %c0_i32 : i32, i32
  }
  func.func @transform_1(%arg0: i32) -> (i32, i32) {
    %c0_i32 = arith.constant 0 : i32
    %c0_i32_0 = arith.constant 0 : i32
    return %arg0, %c0_i32 : i32, i32
  }
}

</mosaic_0001>

<llo_original>
// kernel: tpu_custom_call.1
$region0: #{tpu_custom_call.1}
  #allocation0 [shape = 'u32[]', space=smem, size = 0x4, offset = 0x4, fixed_abs, tag = 'smem constant byte address 0x4 - core index']
  #allocation1 [shape = 'u32[144,128]{1,0:T(1,128)}', space=vmem, size = 0x12000, scoped, tag = 'internal scratch']
  %s0 = inlined_call_operand.hbm [shape: f32[8,256], index: 0, kind: input, shape index: {}]
  %s1 = inlined_call_operand.vmem [shape: f32[8,2], index: 1, kind: output, shape index: {}]
  %s2 = sld [smem:[#allocation0]]
  $region18: #{tpu_custom_call.1} parent=0
    _
  %s4 = ssub.s32 1, %s2
  %s5 = scalar_select 0, %s4, %s2
  $region1: #{tpu_custom_call.1} parent=0
    #allocation2 [shape = 'u8[8192]{0}', space=vmem, size = 0x2000, scoped, tag = 'input window, operand 0, single buffered']
    #allocation3 [shape = 's32[1]{0}', space=sflag, size = 0x4, scoped, tag = 'scoped memory for tpu_custom_call.1']
    %6 = vsyncpa [#allocation3], 0
    // Predicated region
    $region2: #{tpu_custom_call.1} parent=1 // pred_check
      _
    $region3: #{tpu_custom_call.1} parent=1 // pred_check_branch
      %8 = sbr.rel (0) target = $region5
    $region4: #{tpu_custom_call.1} parent=1 // pred_region
      %s10 = ssub.s32 256, 256
      %11 = vsyncadd [#allocation3], %s10
      %s13 = sshll.u32 [#allocation2], 4
      %s14 = int_to_ptr.vmem [resolvable:$true] %s13
      %16 = dma.hbm_to_vmem [thread:$0]  %s0, 256, %s14, [#allocation3]
    $region5: #{tpu_custom_call.1} parent=1 // pred_fallthru
      _
    // Predicated region
    $region6: #{tpu_custom_call.1} parent=1 // pred_check
      _
    $region7: #{tpu_custom_call.1} parent=1 // pred_check_branch
      %18 = sbr.rel (0) target = $region9
    $region8: #{tpu_custom_call.1} parent=1 // pred_region
      %19 = dma.done [#allocation3], 256
    $region9: #{tpu_custom_call.1} parent=1 // pred_fallthru
      _
    %v20 = vld [vmem:[#allocation2] sm:$0xff]
    %v21 = vld [vmem:[#allocation2 + $0x8] sm:$0xff]
    %v22 = vmax.f32 %v20, %v21
    %23 = vmax.xlane.f32.xlu0 %v22
    %v24 = vpop.xlane.xlu0 %23
    %v25 = vadd.f32 %v20, %v21
    %26 = vadd.xlane.f32.xlu0 %v25
    %v27 = vpop.xlane.xlu0 %26
    %v28 = vmul.f32 %v27, 0.00390625
    %v29 = vlaneseq
    %v30 = vand.u32 %v29, 127
    %vm31 = vcmp.eq.s32.totalorder %v30, 0
    %v32 = vsel %vm31, %v24, %v28
    %vm33 = vcmask 15360
    %34 = vst.msk [vmem:[%s1] sm:$0xff] %vm33, %v32
    // Predicated region
    $region10: #{tpu_custom_call.1} parent=1 // pred_check
      _
    $region11: #{tpu_custom_call.1} parent=1 // pred_check_branch
      %36 = sbr.rel (0) target = $region13
    $region12: #{tpu_custom_call.1} parent=1 // pred_region
      _
    $region13: #{tpu_custom_call.1} parent=1 // pred_fallthru
      _
    // Predicated region
    $region14: #{tpu_custom_call.1} parent=1 // pred_check
      _
    $region15: #{tpu_custom_call.1} parent=1 // pred_check_branch
      %38 = sbr.rel (0) target = $region17
    $region16: #{tpu_custom_call.1} parent=1 // pred_region
      _
    $region17: #{tpu_custom_call.1} parent=1 // pred_fallthru
      _
    %39 = vsyncpa [#allocation3], 1

</llo_original>
